<compile_context>
chip_gen: v6e
topology: v6e:2x2x1
jax: 0.10.0
libtpu: 0.0.40
codegen_flags: <defaults>
</compile_context>

<pallas_src>
import functools

import jax
import jax.numpy as jnp
import numpy as np
from jax.experimental import pallas as pl
from jax.experimental.pallas import tpu as pltpu


# ----------------------------------------------------------------------------
# Pallas kernel: BB (batch, visit) pairs per grid step.
# ----------------------------------------------------------------------------
def _gat_kernel(NP, K, TF, BB,
                rel_ref,      # (1, BB*TF*NP*K, R)   relation one-hot/soft weights
                src_ref,      # (1, BB*TF, H)        source embeddings, (f,t) row order
                pdiag_ref,    # (R, H)               diag of each relation matrix W_r
                wz_ref,       # (1, H)               z-part of the attention Linear
                woutT_ref,    # (H, F)               output Linear weight, transposed
                bout_ref,     # (1, F)               output Linear bias
                smat_ref,     # (BB, BB*TF)          per-(b,v) row-sum selection matrix
                out_ref,      # (1, BB, F)
                d_ref):       # scratch (BB*TF*NP*K, H) f32
    NPK = NP * K
    RB = BB * TF

    # (1) ONE fused MXU matmul over every relation row of this grid step.
    #     d[row] = diag( rel[row] @ stack(W_r) )  for row ordered (bb, f, t, p, k).
    d_ref[...] = jnp.dot(rel_ref[0], pdiag_ref[...],
                         preferred_element_type=jnp.float32)

    src = src_ref[0]                   # (RB, H), rows ordered (bb, f, t)
    wz = wz_ref[...]                   # (1, H)

    # (2) Per-path (static unroll, NP small): elementwise product over K of the
    #     relation diagonals (strided VMEM loads, VPU mults), multiply by the
    #     source embedding, and a lane-reduce for the attention logit.
    z_list, logits = [], []
    for p in range(NP):
        acc = d_ref[pl.ds(p * K, RB, stride=NPK), :]
        for k in range(1, K):
            acc = acc * d_ref[pl.ds(p * K + k, RB, stride=NPK), :]
        z_p = acc * src                                            # (RB, H)
        z_list.append(z_p)
        logits.append(jnp.sum(z_p * wz, axis=-1, keepdims=True))   # (RB, 1)

    # (3) Softmax over the NP paths via pairwise VPU max/adds (no concat, no
    #     lane-axis softmax).  The s-dependent term and the bias of the torch
    #     attention Linear are constant across paths -> cancel exactly.
    m = logits[0]
    for p in range(1, NP):
        m = jnp.maximum(m, logits[p])
    es = [jnp.exp(l - m) for l in logits]
    denom = es[0]
    for p in range(1, NP):
        denom = denom + es[p]

    z_agg = es[0] * z_list[0]
    for p in range(1, NP):
        z_agg = z_agg + es[p] * z_list[p]
    z_agg = z_agg / denom                                          # (RB, H)

    # (4) output_layer (dropout = identity at inference): Linear(H->F) + ReLU,
    #     then sum over the TF rows of each (b, v) pair with a tiny selection
    #     matmul -> one dense (BB, F) store per grid step.
    out_pre = jnp.dot(z_agg, woutT_ref[...],
                      preferred_element_type=jnp.float32) + bout_ref[...]
    out_pre = jnp.maximum(out_pre, 0.0)                            # (RB, F)
    out_ref[0] = jnp.dot(smat_ref[...], out_pre,
                         preferred_element_type=jnp.float32)       # (BB, F)


def _pick_block_bv(BV):
    """Largest divisor of BV that still leaves >= 2 grid steps (v7x: 2 TCs)."""
    if BV < 2:
        return BV
    for bb in range(BV // 2, 0, -1):
        if BV % bb == 0:
            return bb
    return 1


# ----------------------------------------------------------------------------
# Wrapper: reshape glue + pallas_call (jit so the HBM-side glue fuses).
# ----------------------------------------------------------------------------
@jax.jit
def graph_attention_forward(source_embed, rel_index, s, params):
    del s  # its attention contribution is constant over paths -> cancels in softmax
    Ws = params["Ws"]          # (R, H, H)
    w_lin = params["w_lin"]    # (1, H + F)   attention Linear weight
    W_out = params["W_out"]    # (F, H)       output Linear weight
    b_out = params["b_out"]    # (F,)         output Linear bias

    bs, nv, mf, mt, NP, K, R = rel_index.shape
    H = Ws.shape[-1]
    F = W_out.shape[0]
    BV = bs * nv
    TF = mf * mt
    rows_per_bv = TF * NP * K

    BB = _pick_block_bv(BV)    # (b,v) pairs per grid step
    G = BV // BB               # grid size (>= 2 when BV >= 2)

    # rel_index: pure reshape only — NO HBM transpose of the largest tensor.
    # Rows within a block are ordered (bb, f, t, p, k).
    rel_k = rel_index.reshape(G, BB * rows_per_bv, R)
    # source_embed is small: swap (t, f) -> (f, t) here so its rows line up
    # with rel's natural (f, t) row order.
    src_k = jnp.transpose(source_embed, (0, 1, 3, 2, 4)).reshape(G, BB * TF, H)

    pdiag = jnp.diagonal(Ws, axis1=1, axis2=2)               # (R, H)
    # torch attention: cat([s, z_j]) @ w_lin.T + b -> first F weights hit s
    # (constant over paths, cancels in softmax), last H weights hit z.
    w_attn_z = w_lin[:, F:]                                  # (1, H)
    W_out_T = W_out.T                                        # (H, F)
    b_out2 = b_out.reshape(1, F)
    # Selection matrix that sums the TF rows of each of the BB pairs.
    smat = jnp.kron(jnp.eye(BB, dtype=jnp.float32),
                    jnp.ones((1, TF), jnp.float32))          # (BB, BB*TF)

    kernel = functools.partial(_gat_kernel, NP, K, TF, BB)

    # TODO(synk): for large MedPath shapes, cap BB so the (BB*TF*NP*K, R) block
    # + scratch fit v7x's 64 MiB VMEM and set vmem_limit_bytes explicitly.
    out = pl.pallas_call(
        kernel,
        out_shape=jax.ShapeDtypeStruct((G, BB, F), jnp.float32),
        grid=(G,),
        in_specs=[
            pl.BlockSpec((1, BB * rows_per_bv, R), lambda i: (i, 0, 0)),
            pl.BlockSpec((1, BB * TF, H), lambda i: (i, 0, 0)),
            pl.BlockSpec((R, H), lambda i: (0, 0)),
            pl.BlockSpec((1, H), lambda i: (0, 0)),
            pl.BlockSpec((H, F), lambda i: (0, 0)),
            pl.BlockSpec((1, F), lambda i: (0, 0)),
            pl.BlockSpec((BB, BB * TF), lambda i: (0, 0)),
        ],
        out_specs=pl.BlockSpec((1, BB, F), lambda i: (i, 0, 0)),
        scratch_shapes=[pltpu.VMEM((BB * rows_per_bv, H), jnp.float32)],
        compiler_params=pltpu.CompilerParams(dimension_semantics=("parallel",)),
    )(rel_k, src_k, pdiag, w_attn_z, W_out_T, b_out2, smat)

    return out.reshape(bs, nv, F)


# ----------------------------------------------------------------------------
# Pure-JAX reference mirroring the torch forward (full (H,H) matrices, incl. s).
# ----------------------------------------------------------------------------
def reference_forward(source_embed, rel_index, s, params):
    Ws, w_lin, b_lin = params["Ws"], params["w_lin"], params["b_lin"]
    W_out, b_out = params["W_out"], params["b_out"]
    R, H, _ = Ws.shape
    bs, nv, mf, mt, NP, K, nr = rel_index.shape
    F = W_out.shape[0]

    param_flat = Ws.reshape(R, -1)
    rels = rel_index.reshape(-1, nr) @ param_flat
    rels = rels.reshape(bs, nv, mf, mt, NP, K, H, H)
    W = jnp.prod(rels, axis=-3)                                  # (b,v,f,t,p,H,H)
    W = jnp.transpose(W, (0, 1, 3, 2, 4, 5, 6))                  # (b,v,t,f,p,H,H)
    W_diag = jnp.diagonal(W, axis1=-2, axis2=-1)                 # (b,v,t,f,p,H)
    z_j = W_diag * source_embed[:, :, :, :, None, :]             # (b,v,t,f,p,H)

    s_b = jnp.broadcast_to(s[:, :, None, None, None, :], (bs, nv, mt, mf, NP, F))
    cat = jnp.concatenate([s_b, z_j], axis=-1)
    attn = (cat @ w_lin.T + b_lin)[..., 0]                       # (b,v,t,f,p)
    attn = jax.nn.softmax(attn, axis=-1)
    z = jnp.einsum("bvtfp,bvtfpd->bvtfd", attn, z_j)
    out = jax.nn.relu(z @ W_out.T + b_out)                       # (b,v,t,f,F)
    return out.sum(axis=-2).sum(axis=-2)                         # (b,v,F)


# ----------------------------------------------------------------------------
if __name__ == "__main__":
    # small shapes implied by the forward pass
    bs, nv, mf, mt, NP, K = 2, 2, 2, 3, 4, 3
    nrelation = 12
    hidden_dim = 32     # H
    noutfeat = 16       # F
    ninfeat = 32        # unused in forward
    alpha = 0.2         # leakyrelu unused in forward

    key = jax.random.PRNGKey(0)
    k_rel, k_src, k_s, k_w, k_lin, k_out = jax.random.split(key, 6)

    # --- deterministic parameter init (shapes from __init__) ---
    gain = 1.414
    limit = gain * np.sqrt(6.0 / (hidden_dim + hidden_dim))
    W_rest = jax.random.uniform(k_w, (nrelation - 1, hidden_dim, hidden_dim),
                                minval=-limit, maxval=limit, dtype=jnp.float32)
    W0 = jnp.ones((1, hidden_dim, hidden_dim), jnp.float32)      # relation 0: fixed ones
    Ws = jnp.concatenate([W0, W_rest], axis=0)                   # (R, H, H)

    lin_in = hidden_dim + noutfeat
    kl1, kl2 = jax.random.split(k_lin)
    w_lin = jax.random.uniform(kl1, (1, lin_in), minval=-1.0 / np.sqrt(lin_in),
                               maxval=1.0 / np.sqrt(lin_in), dtype=jnp.float32)
    b_lin = jax.random.uniform(kl2, (1,), minval=-1.0 / np.sqrt(lin_in),
                               maxval=1.0 / np.sqrt(lin_in), dtype=jnp.float32)

    ko1, ko2 = jax.random.split(k_out)
    W_out = jax.random.uniform(ko1, (noutfeat, hidden_dim),
                               minval=-1.0 / np.sqrt(hidden_dim),
                               maxval=1.0 / np.sqrt(hidden_dim), dtype=jnp.float32)
    b_out = jax.random.uniform(ko2, (noutfeat,),
                               minval=-1.0 / np.sqrt(hidden_dim),
                               maxval=1.0 / np.sqrt(hidden_dim), dtype=jnp.float32)

    params = {"Ws": Ws, "w_lin": w_lin, "b_lin": b_lin,
              "W_out": W_out, "b_out": b_out}

    # --- deterministic inputs ---
    rel_index = jax.random.uniform(k_rel, (bs, nv, mf, mt, NP, K, nrelation),
                                   dtype=jnp.float32)
    source_embed = jax.random.normal(k_src, (bs, nv, mt, mf, hidden_dim),
                                     dtype=jnp.float32)
    s = jax.random.normal(k_s, (bs, nv, noutfeat), dtype=jnp.float32)

    # --- run kernel ---
    out = graph_attention_forward(source_embed, rel_index, s, params)
    out = jax.block_until_ready(out)

    # --- sanity check against pure-JAX reference of the torch forward ---
    ref = jax.block_until_ready(reference_forward(source_embed, rel_index, s, params))
    np.testing.assert_allclose(np.asarray(out), np.asarray(ref), rtol=5e-3, atol=5e-3)
    assert out.shape == (bs, nv, noutfeat)

    print("KERNEL_OK")
</pallas_src>

<mosaic_0001>
module attributes {stable_mosaic.version = 11 : i64} {
  func.func @_gat_kernel(%arg0: i32, %arg1: memref<1x144x12xf32, #tpu.memory_space<vmem>>, %arg2: memref<1x12x32xf32, #tpu.memory_space<vmem>>, %arg3: memref<12x32xf32, #tpu.memory_space<vmem>>, %arg4: memref<1x32xf32, #tpu.memory_space<vmem>>, %arg5: memref<32x16xf32, #tpu.memory_space<vmem>>, %arg6: memref<1x16xf32, #tpu.memory_space<vmem>>, %arg7: memref<2x12xf32, #tpu.memory_space<vmem>>, %arg8: memref<1x2x16xf32, #tpu.memory_space<vmem>>, %arg9: memref<144x32xf32, #tpu.memory_space<vmem>>) attributes {dimension_semantics = [#tpu.dimension_semantics<parallel>], iteration_bounds = array<i64: 2>, scalar_prefetch = 0 : i64, scratch_operands = 1 : i64, tpu.core_type = #tpu.core_type<tc>, window_params = [{transform_indices = @transform_0, window_bounds = array<i64: 1, 144, 12>}, {transform_indices = @transform_1, window_bounds = array<i64: 1, 12, 32>}, {pipeline_mode = #tpu.pipeline_mode<synchronous>, transform_indices = @transform_2, window_bounds = array<i64: 12, 32>}, {pipeline_mode = #tpu.pipeline_mode<synchronous>, transform_indices = @transform_3, window_bounds = array<i64: 1, 32>}, {pipeline_mode = #tpu.pipeline_mode<synchronous>, transform_indices = @transform_4, window_bounds = array<i64: 32, 16>}, {pipeline_mode = #tpu.pipeline_mode<synchronous>, transform_indices = @transform_5, window_bounds = array<i64: 1, 16>}, {pipeline_mode = #tpu.pipeline_mode<synchronous>, transform_indices = @transform_6, window_bounds = array<i64: 2, 12>}, {transform_indices = @transform_7, window_bounds = array<i64: 1, 2, 16>}]} {
    %c0 = arith.constant 0 : index
    %c0_0 = arith.constant 0 : index
    %c0_1 = arith.constant 0 : index
    %0 = vector.load %arg1[%c0, %c0_0, %c0_1] : memref<1x144x12xf32, #tpu.memory_space<vmem>>, vector<1x144x12xf32>
    %1 = vector.shape_cast %0 : vector<1x144x12xf32> to vector<144x12xf32>
    %c0_2 = arith.constant 0 : index
    %c0_3 = arith.constant 0 : index
    %2 = vector.load %arg3[%c0_2, %c0_3] : memref<12x32xf32, #tpu.memory_space<vmem>>, vector<12x32xf32>
    %cst = arith.constant dense<0.000000e+00> : vector<144x32xf32>
    %3 = tpu.matmul %1, %2, %cst {dimension_numbers = #tpu.dot_dimension_numbers<[1], [0], [0], [1], [0, 0, 1, 1], [], []>} : vector<144x12xf32>, vector<12x32xf32>, vector<144x32xf32> -> vector<144x32xf32>
    %c0_4 = arith.constant 0 : index
    %c0_5 = arith.constant 0 : index
    %4 = vector.load %arg9[%c0_4, %c0_5] : memref<144x32xf32, #tpu.memory_space<vmem>>, vector<144x32xf32>
    tpu.vector_store %arg9[%c0_4, %c0_5], %3 {strides = array<i32>} : memref<144x32xf32, #tpu.memory_space<vmem>>, vector<144x32xf32>,
    %c0_6 = arith.constant 0 : index
    %c0_7 = arith.constant 0 : index
    %c0_8 = arith.constant 0 : index
    %5 = vector.load %arg2[%c0_6, %c0_7, %c0_8] : memref<1x12x32xf32, #tpu.memory_space<vmem>>, vector<1x12x32xf32>
    %6 = vector.shape_cast %5 : vector<1x12x32xf32> to vector<12x32xf32>
    %c0_9 = arith.constant 0 : index
    %c0_10 = arith.constant 0 : index
    %7 = vector.load %arg4[%c0_9, %c0_10] : memref<1x32xf32, #tpu.memory_space<vmem>>, vector<1x32xf32>
    %c0_11 = arith.constant 0 : index
    %c0_12 = arith.constant 0 : index
    %8 = tpu.strided_load %arg9[%c0_11, %c0_12] {strides = array<i32: 12, 1>} : memref<144x32xf32, #tpu.memory_space<vmem>>, vector<12x32xf32>
    %c1 = arith.constant 1 : index
    %c0_13 = arith.constant 0 : index
    %9 = tpu.strided_load %arg9[%c1, %c0_13] {strides = array<i32: 12, 1>} : memref<144x32xf32, #tpu.memory_space<vmem>>, vector<12x32xf32>
    %10 = arith.mulf %8, %9 : vector<12x32xf32>
    %c2 = arith.constant 2 : index
    %c0_14 = arith.constant 0 : index
    %11 = tpu.strided_load %arg9[%c2, %c0_14] {strides = array<i32: 12, 1>} : memref<144x32xf32, #tpu.memory_space<vmem>>, vector<12x32xf32>
    %12 = arith.mulf %10, %11 : vector<12x32xf32>
    %13 = arith.mulf %12, %6 : vector<12x32xf32>
    %14 = vector.broadcast %7 : vector<1x32xf32> to vector<12x32xf32>
    %15 = arith.mulf %13, %14 : vector<12x32xf32>
    %cst_15 = arith.constant dense<0.000000e+00> : vector<12xf32>
    %16 = vector.multi_reduction <add>, %15, %cst_15 [1] : vector<12x32xf32> to vector<12xf32>
    %17 = vector.shape_cast %16 : vector<12xf32> to vector<12x1xf32>
    %c3 = arith.constant 3 : index
    %c0_16 = arith.constant 0 : index
    %18 = tpu.strided_load %arg9[%c3, %c0_16] {strides = array<i32: 12, 1>} : memref<144x32xf32, #tpu.memory_space<vmem>>, vector<12x32xf32>
    %c4 = arith.constant 4 : index
    %c0_17 = arith.constant 0 : index
    %19 = tpu.strided_load %arg9[%c4, %c0_17] {strides = array<i32: 12, 1>} : memref<144x32xf32, #tpu.memory_space<vmem>>, vector<12x32xf32>
    %20 = arith.mulf %18, %19 : vector<12x32xf32>
    %c5 = arith.constant 5 : index
    %c0_18 = arith.constant 0 : index
    %21 = tpu.strided_load %arg9[%c5, %c0_18] {strides = array<i32: 12, 1>} : memref<144x32xf32, #tpu.memory_space<vmem>>, vector<12x32xf32>
    %22 = arith.mulf %20, %21 : vector<12x32xf32>
    %23 = arith.mulf %22, %6 : vector<12x32xf32>
    %24 = vector.broadcast %7 : vector<1x32xf32> to vector<12x32xf32>
    %25 = arith.mulf %23, %24 : vector<12x32xf32>
    %cst_19 = arith.constant dense<0.000000e+00> : vector<12xf32>
    %26 = vector.multi_reduction <add>, %25, %cst_19 [1] : vector<12x32xf32> to vector<12xf32>
    %27 = vector.shape_cast %26 : vector<12xf32> to vector<12x1xf32>
    %c6 = arith.constant 6 : index
    %c0_20 = arith.constant 0 : index
    %28 = tpu.strided_load %arg9[%c6, %c0_20] {strides = array<i32: 12, 1>} : memref<144x32xf32, #tpu.memory_space<vmem>>, vector<12x32xf32>
    %c7 = arith.constant 7 : index
    %c0_21 = arith.constant 0 : index
    %29 = tpu.strided_load %arg9[%c7, %c0_21] {strides = array<i32: 12, 1>} : memref<144x32xf32, #tpu.memory_space<vmem>>, vector<12x32xf32>
    %30 = arith.mulf %28, %29 : vector<12x32xf32>
    %c8 = arith.constant 8 : index
    %c0_22 = arith.constant 0 : index
    %31 = tpu.strided_load %arg9[%c8, %c0_22] {strides = array<i32: 12, 1>} : memref<144x32xf32, #tpu.memory_space<vmem>>, vector<12x32xf32>
    %32 = arith.mulf %30, %31 : vector<12x32xf32>
    %33 = arith.mulf %32, %6 : vector<12x32xf32>
    %34 = vector.broadcast %7 : vector<1x32xf32> to vector<12x32xf32>
    %35 = arith.mulf %33, %34 : vector<12x32xf32>
    %cst_23 = arith.constant dense<0.000000e+00> : vector<12xf32>
    %36 = vector.multi_reduction <add>, %35, %cst_23 [1] : vector<12x32xf32> to vector<12xf32>
    %37 = vector.shape_cast %36 : vector<12xf32> to vector<12x1xf32>
    %c9 = arith.constant 9 : index
    %c0_24 = arith.constant 0 : index
    %38 = tpu.strided_load %arg9[%c9, %c0_24] {strides = array<i32: 12, 1>} : memref<144x32xf32, #tpu.memory_space<vmem>>, vector<12x32xf32>
    %c10 = arith.constant 10 : index
    %c0_25 = arith.constant 0 : index
    %39 = tpu.strided_load %arg9[%c10, %c0_25] {strides = array<i32: 12, 1>} : memref<144x32xf32, #tpu.memory_space<vmem>>, vector<12x32xf32>
    %40 = arith.mulf %38, %39 : vector<12x32xf32>
    %c11 = arith.constant 11 : index
    %c0_26 = arith.constant 0 : index
    %41 = tpu.strided_load %arg9[%c11, %c0_26] {strides = array<i32: 12, 1>} : memref<144x32xf32, #tpu.memory_space<vmem>>, vector<12x32xf32>
    %42 = arith.mulf %40, %41 : vector<12x32xf32>
    %43 = arith.mulf %42, %6 : vector<12x32xf32>
    %44 = vector.broadcast %7 : vector<1x32xf32> to vector<12x32xf32>
    %45 = arith.mulf %43, %44 : vector<12x32xf32>
    %cst_27 = arith.constant dense<0.000000e+00> : vector<12xf32>
    %46 = vector.multi_reduction <add>, %45, %cst_27 [1] : vector<12x32xf32> to vector<12xf32>
    %47 = vector.shape_cast %46 : vector<12xf32> to vector<12x1xf32>
    %48 = arith.maximumf %17, %27 : vector<12x1xf32>
    %49 = arith.maximumf %48, %37 : vector<12x1xf32>
    %50 = arith.maximumf %49, %47 : vector<12x1xf32>
    %51 = arith.subf %17, %50 : vector<12x1xf32>
    %52 = math.exp %51 : vector<12x1xf32>
    %53 = arith.subf %27, %50 : vector<12x1xf32>
    %54 = math.exp %53 : vector<12x1xf32>
    %55 = arith.subf %37, %50 : vector<12x1xf32>
    %56 = math.exp %55 : vector<12x1xf32>
    %57 = arith.subf %47, %50 : vector<12x1xf32>
    %58 = math.exp %57 : vector<12x1xf32>
    %59 = arith.addf %52, %54 : vector<12x1xf32>
    %60 = arith.addf %59, %56 : vector<12x1xf32>
    %61 = arith.addf %60, %58 : vector<12x1xf32>
    %62 = vector.broadcast %52 : vector<12x1xf32> to vector<12x32xf32>
    %63 = arith.mulf %62, %13 : vector<12x32xf32>
    %64 = vector.broadcast %54 : vector<12x1xf32> to vector<12x32xf32>
    %65 = arith.mulf %64, %23 : vector<12x32xf32>
    %66 = arith.addf %63, %65 : vector<12x32xf32>
    %67 = vector.broadcast %56 : vector<12x1xf32> to vector<12x32xf32>
    %68 = arith.mulf %67, %33 : vector<12x32xf32>
    %69 = arith.addf %66, %68 : vector<12x32xf32>
    %70 = vector.broadcast %58 : vector<12x1xf32> to vector<12x32xf32>
    %71 = arith.mulf %70, %43 : vector<12x32xf32>
    %72 = arith.addf %69, %71 : vector<12x32xf32>
    %73 = vector.broadcast %61 : vector<12x1xf32> to vector<12x32xf32>
    %74 = arith.divf %72, %73 : vector<12x32xf32>
    %c0_28 = arith.constant 0 : index
    %c0_29 = arith.constant 0 : index
    %75 = vector.load %arg5[%c0_28, %c0_29] : memref<32x16xf32, #tpu.memory_space<vmem>>, vector<32x16xf32>
    %cst_30 = arith.constant dense<0.000000e+00> : vector<12x16xf32>
    %76 = tpu.matmul %74, %75, %cst_30 {dimension_numbers = #tpu.dot_dimension_numbers<[1], [0], [0], [1], [0, 0, 1, 1], [], []>} : vector<12x32xf32>, vector<32x16xf32>, vector<12x16xf32> -> vector<12x16xf32>
    %c0_31 = arith.constant 0 : index
    %c0_32 = arith.constant 0 : index
    %77 = vector.load %arg6[%c0_31, %c0_32] : memref<1x16xf32, #tpu.memory_space<vmem>>, vector<1x16xf32>
    %78 = vector.broadcast %77 : vector<1x16xf32> to vector<12x16xf32>
    %79 = arith.addf %76, %78 : vector<12x16xf32>
    %cst_33 = arith.constant 0.000000e+00 : f32
    %80 = vector.broadcast %cst_33 : f32 to vector<12x16xf32>
    %81 = arith.maximumf %79, %80 : vector<12x16xf32>
    %c0_34 = arith.constant 0 : index
    %c0_35 = arith.constant 0 : index
    %82 = vector.load %arg7[%c0_34, %c0_35] : memref<2x12xf32, #tpu.memory_space<vmem>>, vector<2x12xf32>
    %cst_36 = arith.constant dense<0.000000e+00> : vector<2x16xf32>
    %83 = tpu.matmul %82, %81, %cst_36 {dimension_numbers = #tpu.dot_dimension_numbers<[1], [0], [0], [1], [0, 0, 1, 1], [], []>} : vector<2x12xf32>, vector<12x16xf32>, vector<2x16xf32> -> vector<2x16xf32>
    %c0_37 = arith.constant 0 : index
    %c0_38 = arith.constant 0 : index
    %c0_39 = arith.constant 0 : index
    %84 = vector.load %arg8[%c0_37, %c0_38, %c0_39] : memref<1x2x16xf32, #tpu.memory_space<vmem>>, vector<1x2x16xf32>
    %85 = vector.shape_cast %84 : vector<1x2x16xf32> to vector<2x16xf32>
    %86 = vector.shape_cast %83 : vector<2x16xf32> to vector<1x2x16xf32>
    tpu.vector_store %arg8[%c0_37, %c0_38, %c0_39], %86 {strides = array<i32>} : memref<1x2x16xf32, #tpu.memory_space<vmem>>, vector<1x2x16xf32>,
    return
  }
  func.func @transform_0(%arg0: i32) -> (i32, i32, i32) {
    %c0_i32 = arith.constant 0 : i32
    %c0_i32_0 = arith.constant 0 : i32
    %c0_i32_1 = arith.constant 0 : i32
    return %arg0, %c0_i32, %c0_i32_0 : i32, i32, i32
  }
  func.func @transform_1(%arg0: i32) -> (i32, i32, i32) {
    %c0_i32 = arith.constant 0 : i32
    %c0_i32_0 = arith.constant 0 : i32
    %c0_i32_1 = arith.constant 0 : i32
    return %arg0, %c0_i32, %c0_i32_0 : i32, i32, i32
  }
  func.func @transform_2(%arg0: i32) -> (i32, i32) {
    %c0_i32 = arith.constant 0 : i32
    %c0_i32_0 = arith.constant 0 : i32
    %c0_i32_1 = arith.constant 0 : i32
    return %c0_i32, %c0_i32_0 : i32, i32
  }
  func.func @transform_3(%arg0: i32) -> (i32, i32) {
    %c0_i32 = arith.constant 0 : i32
    %c0_i32_0 = arith.constant 0 : i32
    %c0_i32_1 = arith.constant 0 : i32
    return %c0_i32, %c0_i32_0 : i32, i32
  }
  func.func @transform_4(%arg0: i32) -> (i32, i32) {
    %c0_i32 = arith.constant 0 : i32
    %c0_i32_0 = arith.constant 0 : i32
    %c0_i32_1 = arith.constant 0 : i32
    return %c0_i32, %c0_i32_0 : i32, i32
  }
  func.func @transform_5(%arg0: i32) -> (i32, i32) {
    %c0_i32 = arith.constant 0 : i32
    %c0_i32_0 = arith.constant 0 : i32
    %c0_i32_1 = arith.constant 0 : i32
    return %c0_i32, %c0_i32_0 : i32, i32
  }
  func.func @transform_6(%arg0: i32) -> (i32, i32) {
    %c0_i32 = arith.constant 0 : i32
    %c0_i32_0 = arith.constant 0 : i32
    %c0_i32_1 = arith.constant 0 : i32
    return %c0_i32, %c0_i32_0 : i32, i32
  }
  func.func @transform_7(%arg0: i32) -> (i32, i32, i32) {
    %c0_i32 = arith.constant 0 : i32
    %c0_i32_0 = arith.constant 0 : i32
    %c0_i32_1 = arith.constant 0 : i32
    return %arg0, %c0_i32, %c0_i32_0 : i32, i32, i32
  }
}

</mosaic_0001>

<llo_original>
// kernel: graph_attention_forward.1
$region0: #{graph_attention_forward.1}
  #allocation0 [shape = 'u32[]', space=smem, size = 0x4, offset = 0x4, fixed_abs, tag = 'smem constant byte address 0x4 - core index']
  #allocation1 [shape = 'u32[144,128]{1,0:T(1,128)}', space=vmem, size = 0x12000, scoped, tag = 'internal scratch']
  #allocation2 [shape = 'f32[144,32]{1,0:T(8,128)}', space=vmem, size = 0x12000, scoped, tag = 'scratch operand']
  %s0 = inlined_call_operand.vmem [shape: f32[2,144,12], index: 0, kind: input, shape index: {}]
  %s1 = inlined_call_operand.vmem [shape: f32[2,12,32], index: 1, kind: input, shape index: {}]
  %s2 = inlined_call_operand.vmem [shape: f32[12,32], index: 2, kind: input, shape index: {}]
  %s3 = inlined_call_operand.vmem [shape: f32[1,32], index: 3, kind: input, shape index: {}]
  %s4 = inlined_call_operand.vmem [shape: f32[32,16], index: 4, kind: input, shape index: {}]
  %s5 = inlined_call_operand.vmem [shape: f32[1,16], index: 5, kind: input, shape index: {}]
  %s6 = inlined_call_operand.vmem [shape: f32[2,12], index: 6, kind: input, shape index: {}]
  %s7 = inlined_call_operand.hbm [shape: f32[2,2,16], index: 7, kind: output, shape index: {}]
  %s8 = sld [smem:[#allocation0]]
  $region61: #{graph_attention_forward.1} parent=0
    _
  %s10 = ssub.s32 1, %s8
  %s11 = scalar_select 0, %s10, %s8
  $region1: #{graph_attention_forward.1} parent=0
    #allocation3 [shape = 'u8[2048]{0}', space=vmem, size = 0x800, scoped, tag = 'output window, operand 0']
    #allocation4 [shape = 's32[2]{0}', space=sflag, size = 0x8, scoped, tag = 'scoped memory for graph_attention_forward.1']
    %12 = vsyncpa [#allocation4], 0
    %s13 = scalar_lea.sflag [#allocation4], 1
    %14 = vsyncpa %s13, 0
    loop: start=0, step=1, limit=4
    $region2: #{graph_attention_forward.1} parent=1 // loop_pre_header
      _
    $region3: #{graph_attention_forward.1} parent=1 // loop_header
      %s16 = sphi 0, %s20
      %p17 = scmp.ge.s32.totalorder %s16, 4
      %s26 = sphi 0, %s28
      %s29 = sphi 0, %s26
      %s30 = sphi 0, %s29
      %s46 = sphi 0, %s30
      %s52 = sphi 0, %s54
      %s55 = sphi 0, %s52
      %s56 = sphi 0, %s55
      %s72 = sphi 0, %s56
      %s76 = sphi 0, %s76
      %s78 = sphi 0, %s76
      %s79 = sphi 0, %s78
      %s93 = sphi 0, %s79
      %s97 = sphi 0, %s97
      %s99 = sphi 0, %s97
      %s100 = sphi 0, %s99
      %s114 = sphi 0, %s100
      %s118 = sphi 0, %s118
      %s120 = sphi 0, %s118
      %s121 = sphi 0, %s120
      %s135 = sphi 0, %s121
      %s139 = sphi 0, %s139
      %s141 = sphi 0, %s139
      %s142 = sphi 0, %s141
      %s156 = sphi 0, %s142
      %s160 = sphi 0, %s160
      %s162 = sphi 0, %s160
      %s163 = sphi 0, %s162
      %s177 = sphi 0, %s163
      %s183 = sphi 0, %s185
      %s186 = sphi 0, %s183
      %s187 = sphi 0, %s186
      %s203 = sphi 0, %s187
    $region4: #{graph_attention_forward.1} parent=1 // loop_header_branch
      %19 = sbr.rel (%p17) target = $region8
    $region5: #{graph_attention_forward.1} parent=1 // loop_body
      %s21 = ssub.s32 %s16, 1
      %s22 = ssub.s32 %s16, 2
      %s23 = sadd.s32 %s16, 1
      %s24 = ssub.s32 %s16, %s23
      %p25 = scmp.eq.s32.totalorder %s24, 0
      %s27 = sadd.s32 %s26, 1
      %s28 = scalar_select %p25, %s26, %s27
      %p31 = pneg %p25
      %p32 = scmp.eq.s32.totalorder %s16, 1
      %p33 = por %p31, %p32
      %p34 = scmp.ne.s32.totalorder %s26, %s29
      %p35 = scmp.eq.s32.totalorder %s16, 0
      %p36 = por %p34, %p35
      %p37 = scmp.ne.s32.totalorder %s26, %s29
      %p38 = scmp.eq.s32.totalorder %s21, 1
      %p39 = por %p37, %p38
      %p40 = scmp.ne.s32.totalorder %s29, %s30
      %p41 = scmp.eq.s32.totalorder %s21, 0
      %p42 = por %p40, %p41
      %p43 = scmp.ne.s32.totalorder %s29, %s30
      %p44 = scmp.eq.s32.totalorder %s22, 1
      %p45 = por %p43, %p44
      %p47 = scmp.ne.s32.totalorder %s30, %s46
      %p48 = scmp.eq.s32.totalorder %s22, 0
      %p49 = por %p47, %p48
      %s50 = ssub.s32 %s16, %s23
      %p51 = scmp.eq.s32.totalorder %s50, 0
      %s53 = sadd.s32 %s52, 1
      %s54 = scalar_select %p51, %s52, %s53
      %p57 = pneg %p51
      %p58 = scmp.eq.s32.totalorder %s16, 1
      %p59 = por %p57, %p58
      %p60 = scmp.ne.s32.totalorder %s52, %s55
      %p61 = scmp.eq.s32.totalorder %s16, 0
      %p62 = por %p60, %p61
      %p63 = scmp.ne.s32.totalorder %s52, %s55
      %p64 = scmp.eq.s32.totalorder %s21, 1
      %p65 = por %p63, %p64
      %p66 = scmp.ne.s32.totalorder %s55, %s56
      %p67 = scmp.eq.s32.totalorder %s21, 0
      %p68 = por %p66, %p67
      %p69 = scmp.ne.s32.totalorder %s55, %s56
      %p70 = scmp.eq.s32.totalorder %s22, 1
      %p71 = por %p69, %p70
      %p73 = scmp.ne.s32.totalorder %s56, %s72
      %p74 = scmp.eq.s32.totalorder %s22, 0
      %p75 = por %p73, %p74
      %s77 = sadd.s32 %s76, 1
      %p80 = scmp.eq.s32.totalorder %s16, 1
      %p81 = scmp.ne.s32.totalorder %s76, %s78
      %p82 = scmp.eq.s32.totalorder %s16, 0
      %p83 = por %p81, %p82
      %p84 = scmp.ne.s32.totalorder %s76, %s78
      %p85 = scmp.eq.s32.totalorder %s21, 1
      %p86 = por %p84, %p85
      %p87 = scmp.ne.s32.totalorder %s78, %s79
      %p88 = scmp.eq.s32.totalorder %s21, 0
      %p89 = por %p87, %p88
      %p90 = scmp.ne.s32.totalorder %s78, %s79
      %p91 = scmp.eq.s32.totalorder %s22, 1
      %p92 = por %p90, %p91
      %p94 = scmp.ne.s32.totalorder %s79, %s93
      %p95 = scmp.eq.s32.totalorder %s22, 0
      %p96 = por %p94, %p95
      %s98 = sadd.s32 %s97, 1
      %p101 = scmp.eq.s32.totalorder %s16, 1
      %p102 = scmp.ne.s32.totalorder %s97, %s99
      %p103 = scmp.eq.s32.totalorder %s16, 0
      %p104 = por %p102, %p103
      %p105 = scmp.ne.s32.totalorder %s97, %s99
      %p106 = scmp.eq.s32.totalorder %s21, 1
      %p107 = por %p105, %p106
      %p108 = scmp.ne.s32.totalorder %s99, %s100
      %p109 = scmp.eq.s32.totalorder %s21, 0
      %p110 = por %p108, %p109
      %p111 = scmp.ne.s32.totalorder %s99, %s100
      %p112 = scmp.eq.s32.totalorder %s22, 1
      %p113 = por %p111, %p112
      %p115 = scmp.ne.s32.totalorder %s100, %s114
      %p116 = scmp.eq.s32.totalorder %s22, 0
      %p117 = por %p115, %p116
      %s119 = sadd.s32 %s118, 1
      %p122 = scmp.eq.s32.totalorder %s16, 1
      %p123 = scmp.ne.s32.totalorder %s118, %s120
      %p124 = scmp.eq.s32.totalorder %s16, 0
      %p125 = por %p123, %p124
      %p126 = scmp.ne.s32.totalorder %s118, %s120
      %p127 = scmp.eq.s32.totalorder %s21, 1
      %p128 = por %p126, %p127
      %p129 = scmp.ne.s32.totalorder %s120, %s121
      %p130 = scmp.eq.s32.totalorder %s21, 0
      %p131 = por %p129, %p130
      %p132 = scmp.ne.s32.totalorder %s120, %s121
      %p133 = scmp.eq.s32.totalorder %s22, 1
      %p134 = por %p132, %p133
      %p136 = scmp.ne.s32.totalorder %s121, %s135
      %p137 = scmp.eq.s32.totalorder %s22, 0
      %p138 = por %p136, %p137
      %s140 = sadd.s32 %s139, 1
      %p143 = scmp.eq.s32.totalorder %s16, 1
      %p144 = scmp.ne.s32.totalorder %s139, %s141
      %p145 = scmp.eq.s32.totalorder %s16, 0
      %p146 = por %p144, %p145
      %p147 = scmp.ne.s32.totalorder %s139, %s141
      %p148 = scmp.eq.s32.totalorder %s21, 1
      %p149 = por %p147, %p148
      %p150 = scmp.ne.s32.totalorder %s141, %s142
      %p151 = scmp.eq.s32.totalorder %s21, 0
      %p152 = por %p150, %p151
      %p153 = scmp.ne.s32.totalorder %s141, %s142
      %p154 = scmp.eq.s32.totalorder %s22, 1
      %p155 = por %p153, %p154
      %p157 = scmp.ne.s32.totalorder %s142, %s156
      %p158 = scmp.eq.s32.totalorder %s22, 0
      %p159 = por %p157, %p158
      %s161 = sadd.s32 %s160, 1
      %p164 = scmp.eq.s32.totalorder %s16, 1
      %p165 = scmp.ne.s32.totalorder %s160, %s162
      %p166 = scmp.eq.s32.totalorder %s16, 0
      %p167 = por %p165, %p166
      %p168 = scmp.ne.s32.totalorder %s160, %s162
      %p169 = scmp.eq.s32.totalorder %s21, 1
      %p170 = por %p168, %p169
      %p171 = scmp.ne.s32.totalorder %s162, %s163
      %p172 = scmp.eq.s32.totalorder %s21, 0
      %p173 = por %p171, %p172
      %p174 = scmp.ne.s32.totalorder %s162, %s163
      %p175 = scmp.eq.s32.totalorder %s22, 1
      %p176 = por %p174, %p175
      %p178 = scmp.ne.s32.totalorder %s163, %s177
      %p179 = scmp.eq.s32.totalorder %s22, 0
      %p180 = por %p178, %p179
      %s181 = ssub.s32 %s16, %s23
      %p182 = scmp.eq.s32.totalorder %s181, 0
      %s184 = sadd.s32 %s183, 1
      %s185 = scalar_select %p182, %s183, %s184
      %p188 = pneg %p182
      %p189 = scmp.eq.s32.totalorder %s16, 1
      %p190 = por %p188, %p189
      %p191 = scmp.ne.s32.totalorder %s183, %s186
      %p192 = scmp.eq.s32.totalorder %s16, 0
      %p193 = por %p191, %p192
      %p194 = scmp.ne.s32.totalorder %s183, %s186
      %p195 = scmp.eq.s32.totalorder %s21, 1
      %p196 = por %p194, %p195
      %p197 = scmp.ne.s32.totalorder %s186, %s187
      %p198 = scmp.eq.s32.totalorder %s21, 0
      %p199 = por %p197, %p198
      %p200 = scmp.ne.s32.totalorder %s186, %s187
      %p201 = scmp.eq.s32.totalorder %s22, 1
      %p202 = por %p200, %p201
      %p204 = scmp.ne.s32.totalorder %s187, %s203
      %p205 = scmp.eq.s32.totalorder %s22, 0
      %p206 = por %p204, %p205
      %p207 = scmp.le.s32.totalorder 1, %s16
      %p208 = scmp.lt.s32.totalorder %s16, 3
      %p209 = pnand %p207, %p208
      %p210 = pneg %p209
      // Predicated region
      $region9: #{graph_attention_forward.1} parent=5 // pred_check
        _
      $region10: #{graph_attention_forward.1} parent=5 // pred_check_branch
        %212 = sbr.rel (%p209) target = $region12
      $region11: #{graph_attention_forward.1} parent=5 // pred_region
        %s213 = ssub.s32 %s16, 1
        // Predicated region
        $region13: #{graph_attention_forward.1} parent=11 // pred_check
          %p214 = pneg %p89
        $region14: #{graph_attention_forward.1} parent=11 // pred_check_branch
          %216 = sbr.rel (%p214) target = $region16
        $region15: #{graph_attention_forward.1} parent=11 // pred_region
          _
        $region16: #{graph_attention_forward.1} parent=11 // pred_fallthru
          _
        // Predicated region
        $region17: #{graph_attention_forward.1} parent=11 // pred_check
          %p217 = pneg %p110
        $region18: #{graph_attention_forward.1} parent=11 // pred_check_branch
          %219 = sbr.rel (%p217) target = $region20
        $region19: #{graph_attention_forward.1} parent=11 // pred_region
          _
        $region20: #{graph_attention_forward.1} parent=11 // pred_fallthru
          _
        // Predicated region
        $region21: #{graph_attention_forward.1} parent=11 // pred_check
          %p220 = pneg %p131
        $region22: #{graph_attention_forward.1} parent=11 // pred_check_branch
          %222 = sbr.rel (%p220) target = $region24
        $region23: #{graph_attention_forward.1} parent=11 // pred_region
          _
        $region24: #{graph_attention_forward.1} parent=11 // pred_fallthru
          _
        // Predicated region
        $region25: #{graph_attention_forward.1} parent=11 // pred_check
          %p223 = pneg %p152
        $region26: #{graph_attention_forward.1} parent=11 // pred_check_branch
          %225 = sbr.rel (%p223) target = $region28
        $region27: #{graph_attention_forward.1} parent=11 // pred_region
          _
        $region28: #{graph_attention_forward.1} parent=11 // pred_fallthru
          _
        // Predicated region
        $region29: #{graph_attention_forward.1} parent=11 // pred_check
          %p226 = pneg %p173
        $region30: #{graph_attention_forward.1} parent=11 // pred_check_branch
          %228 = sbr.rel (%p226) target = $region32
        $region31: #{graph_attention_forward.1} parent=11 // pred_region
          _
        $region32: #{graph_attention_forward.1} parent=11 // pred_fallthru
          _
      $region12: #{graph_attention_forward.1} parent=5 // pred_fallthru
        _
      %p229 = scmp.lt.s32.totalorder %s16, 2
      // Predicated region
      $region33: #{graph_attention_forward.1} parent=5 // pred_check
        %p230 = pneg %p229
      $region34: #{graph_attention_forward.1} parent=5 // pred_check_branch
        %232 = sbr.rel (%p230) target = $region36
      $region35: #{graph_attention_forward.1} parent=5 // pred_region
        // Predicated region
        $region37: #{graph_attention_forward.1} parent=35 // pred_check
          %p233 = pneg %p36
        $region38: #{graph_attention_forward.1} parent=35 // pred_check_branch
          %235 = sbr.rel (%p233) target = $region40
        $region39: #{graph_attention_forward.1} parent=35 // pred_region
          %p236 = scmp.lt.s32.totalorder %s16, 1
          %s237 = scalar_select %p236, %s16, 1
          %s238 = smul.addr %s237, 18
          %s239 = smul.addr %s238, 8
          %s240 = scalar_lea.vmem %s0, %s239
        $region40: #{graph_attention_forward.1} parent=35 // pred_fallthru
          _
        // Predicated region
        $region41: #{graph_attention_forward.1} parent=35 // pred_check
          %p241 = pneg %p62
        $region42: #{graph_attention_forward.1} parent=35 // pred_check_branch
          %243 = sbr.rel (%p241) target = $region44
        $region43: #{graph_attention_forward.1} parent=35 // pred_region
          %p244 = scmp.lt.s32.totalorder %s16, 1
          %s245 = scalar_select %p244, %s16, 1
          %s246 = smul.addr %s245, 2
          %s247 = smul.addr %s246, 8
          %s248 = scalar_lea.vmem %s1, %s247
        $region44: #{graph_attention_forward.1} parent=35 // pred_fallthru
          _
      $region36: #{graph_attention_forward.1} parent=5 // pred_fallthru
        _
      %p249 = scmp.le.s32.totalorder 1, %s16
      %p250 = scmp.lt.s32.totalorder %s16, 3
      %p251 = pnand %p249, %p250
      %p252 = pneg %p251
      // Predicated region
      $region45: #{graph_attention_forward.1} parent=5 // pred_check
        _
      $region46: #{graph_attention_forward.1} parent=5 // pred_check_branch
        %254 = sbr.rel (%p251) target = $region48
      $region47: #{graph_attention_forward.1} parent=5 // pred_region
        %s255 = ssub.s32 %s16, 1
        %p256 = scmp.lt.s32.totalorder %s21, 1
        %s257 = scalar_select %p256, %s21, 1
        %s258 = smul.addr %s257, 18
        %s259 = smul.addr %s258, 8
        %s260 = scalar_lea.vmem %s0, %s259
        %p261 = pneg %p42
        %p262 = pneg %p39
        %p263 = scmp.lt.s32.totalorder %s21, 1
        %s264 = scalar_select %p263, %s21, 1
        %s265 = smul.addr %s264, 2
        %s266 = smul.addr %s265, 8
        %s267 = scalar_lea.vmem %s1, %s266
        %p268 = pneg %p68
        %p269 = pneg %p65
        %p270 = pneg %p89
        %p271 = pneg %p86
        %p272 = pneg %p110
        %p273 = pneg %p107
        %p274 = pneg %p131
        %p275 = pneg %p128
        %p276 = pneg %p152
        %p277 = pneg %p149
        %p278 = pneg %p173
        %p279 = pneg %p170
        %p280 = pneg %p199
        %p281 = pneg %p196
        %s282 = sand.u32 %s186, 1
        %s283 = scalar_lea.sflag [#allocation4], %s282
        %s284 = sand.u32 %s186, 1
        %s285 = smul.addr %s284, 2
        %s286 = scalar_lea.vmem [#allocation3], %s285
        %p287 = scmp.lt.s32.totalorder %s21, 1
        %s288 = scalar_select %p287, %s21, 1
        %s289 = smul.addr %s288, 18
        %s290 = smul.addr %s289, 8
        %s291 = scalar_lea.vmem %s0, %s290
        %p292 = scmp.lt.s32.totalorder %s21, 1
        %s293 = scalar_select %p292, %s21, 1
        %s294 = smul.addr %s293, 2
        %s295 = smul.addr %s294, 8
        %s296 = scalar_lea.vmem %s1, %s295
        %v297 = vld [vmem:[%s291] sm:$0xff]
        %v298 = vld [vmem:[%s291 + $0x8] sm:$0xff]
        %v299 = vld [vmem:[%s291 + $0x10] sm:$0xff]
        %v300 = vld [vmem:[%s291 + $0x18] sm:$0xff]
        %v301 = vld [vmem:[%s291 + $0x20] sm:$0xff]
        %v302 = vld [vmem:[%s291 + $0x28] sm:$0xff]
        %v303 = vld [vmem:[%s291 + $0x30] sm:$0xff]
        %v304 = vld [vmem:[%s291 + $0x38] sm:$0xff]
        %v305 = vld [vmem:[%s291 + $0x40] sm:$0xff]
        %v306 = vld [vmem:[%s291 + $0x48] sm:$0xff]
        %v307 = vld [vmem:[%s291 + $0x50] sm:$0xff]
        %v308 = vld [vmem:[%s291 + $0x58] sm:$0xff]
        %v309 = vld [vmem:[%s291 + $0x60] sm:$0xff]
        %v310 = vld [vmem:[%s291 + $0x68] sm:$0xff]
        %v311 = vld [vmem:[%s291 + $0x70] sm:$0xff]
        %v312 = vld [vmem:[%s291 + $0x78] sm:$0xff]
        %v313 = vld [vmem:[%s291 + $0x80] sm:$0xff]
        %v314 = vld [vmem:[%s291 + $0x88] sm:$0xff]
        %v315 = vld [vmem:[%s2] sm:$0xff]
        %v316 = vld [vmem:[%s2 + $0x8] sm:$0xf]
        %vm317 = vcmask 97280
        %v319 = vsel %vm317, %v297, 0
        %v322 = vsel %vm317, %v298, 0
        %v325 = vsel %vm317, %v299, 0
        %v328 = vsel %vm317, %v300, 0
        %v331 = vsel %vm317, %v301, 0
        %v334 = vsel %vm317, %v302, 0
        %v337 = vsel %vm317, %v303, 0
        %v340 = vsel %vm317, %v304, 0
        %v343 = vsel %vm317, %v305, 0
        %v346 = vsel %vm317, %v306, 0
        %v349 = vsel %vm317, %v307, 0
        %v352 = vsel %vm317, %v308, 0
        %v355 = vsel %vm317, %v309, 0
        %v358 = vsel %vm317, %v310, 0
        %v361 = vsel %vm317, %v311, 0
        %v364 = vsel %vm317, %v312, 0
        %v367 = vsel %vm317, %v313, 0
        %v370 = vsel %vm317, %v314, 0
        %vm372 = vcmask 1043456
        %v374 = vsel %vm372, %v316, 0
        %376 = vmatprep.subr.mxu0 0.0
        %377 = vmatpush1.msra.mxu0 0.0
        %378 = vmatprep.subr.mxu0 0.0
        %379 = vmatpush1.msra.mxu0 0.0
        %380 = vmatprep.subr.mxu0 0.0
        %381 = vmatpush1.msra.mxu0 0.0
        %382 = vmatprep.subr.mxu0 0.0
        %383 = vmatpush1.msra.mxu0 0.0
        %384 = vmatprep.subr.mxu0 0.0
        %385 = vmatpush1.msra.mxu0 0.0
        %386 = vmatprep.subr.mxu0 0.0
        %387 = vmatpush1.msra.mxu0 0.0
        %388 = vmatprep.subr.mxu0 0.0
        %389 = vmatpush1.msra.mxu0 0.0
        %390 = vmatprep.subr.mxu0 0.0
        %391 = vmatpush1.msra.mxu0 0.0
        %392 = vmatprep.subr.mxu0 0.0
        %393 = vmatpush1.msra.mxu0 0.0
        %394 = vmatprep.subr.mxu0 0.0
        %395 = vmatpush1.msra.mxu0 0.0
        %396 = vmatprep.subr.mxu0 0.0
        %397 = vmatpush1.msra.mxu0 0.0
        %398 = vmatprep.subr.mxu0 0.0
        %399 = vmatpush1.msra.mxu0 0.0
        %400 = vmatprep.subr.mxu0 0.0
        %401 = vmatpush1.msra.mxu0 0.0
        %402 = vmatprep.subr.mxu0 0.0
        %403 = vmatpush1.msra.mxu0 0.0
        %404 = vmatprep.subr.mxu0 0.0
        %405 = vmatpush1.msra.mxu0 %v374
        %406 = vmatprep.subr.mxu0 0.0
        %407 = vmatpush1.msra.mxu0 %v315
        %408 = vmatprep.subr.mxu0 0.0
        %409 = vmatpush2.msra.mxu0 0.0
        %410 = vmatprep.subr.mxu0 0.0
        %411 = vmatpush2.msra.mxu0 0.0
        %412 = vmatprep.subr.mxu0 0.0
        %413 = vmatpush2.msra.mxu0 0.0
        %414 = vmatprep.subr.mxu0 0.0
        %415 = vmatpush2.msra.mxu0 0.0
        %416 = vmatprep.subr.mxu0 0.0
        %417 = vmatpush2.msra.mxu0 0.0
        %418 = vmatprep.subr.mxu0 0.0
        %419 = vmatpush2.msra.mxu0 0.0
        %420 = vmatprep.subr.mxu0 0.0
        %421 = vmatpush2.msra.mxu0 0.0
        %422 = vmatprep.subr.mxu0 0.0
        %423 = vmatpush2.msra.mxu0 0.0
        %424 = vmatprep.subr.mxu0 0.0
        %425 = vmatpush2.msra.mxu0 0.0
        %426 = vmatprep.subr.mxu0 0.0
        %427 = vmatpush2.msra.mxu0 0.0
        %428 = vmatprep.subr.mxu0 0.0
        %429 = vmatpush2.msra.mxu0 0.0
        %430 = vmatprep.subr.mxu0 0.0
        %431 = vmatpush2.msra.mxu0 0.0
        %432 = vmatprep.subr.mxu0 0.0
        %433 = vmatpush2.msra.mxu0 0.0
        %434 = vmatprep.subr.mxu0 0.0
        %435 = vmatpush2.msra.mxu0 0.0
        %436 = vmatprep.subr.mxu0 0.0
        %437 = vmatpush2.msra.mxu0 0.0
        %438 = vmatprep.subr.mxu0 0.0
        %439 = vmatpush2.msra.mxu0 0.0
        %440 = vmatprep.mubr.f32.mxu0 0.0
        %441 = vmatmul.mubr.f32.gmra.mxu0 %v319
        %v442 = vpop.f32.mrf.mxu0
        %v443 = vadd.f32 0.0, %v442
        %v444 = vpop.f32.mrf.mxu0
        %445 = vmatprep.mubr.f32.mxu0 0.0
        %446 = vmatmul.mubr.f32.gmra.mxu0 %v322
        %v447 = vpop.f32.mrf.mxu0
        %v448 = vadd.f32 0.0, %v447
        %v449 = vpop.f32.mrf.mxu0
        %450 = vmatprep.mubr.f32.mxu0 0.0
        %451 = vmatmul.mubr.f32.gmra.mxu0 %v325
        %v452 = vpop.f32.mrf.mxu0
        %v453 = vadd.f32 0.0, %v452
        %v454 = vpop.f32.mrf.mxu0
        %455 = vmatprep.mubr.f32.mxu0 0.0
        %456 = vmatmul.mubr.f32.gmra.mxu0 %v328
        %v457 = vpop.f32.mrf.mxu0
        %v458 = vadd.f32 0.0, %v457
        %v459 = vpop.f32.mrf.mxu0
        %460 = vmatprep.mubr.f32.mxu0 0.0
        %461 = vmatmul.mubr.f32.gmra.mxu0 %v331
        %v462 = vpop.f32.mrf.mxu0
        %v463 = vadd.f32 0.0, %v462
        %v464 = vpop.f32.mrf.mxu0
        %465 = vmatprep.mubr.f32.mxu0 0.0
        %466 = vmatmul.mubr.f32.gmra.mxu0 %v334
        %v467 = vpop.f32.mrf.mxu0
        %v468 = vadd.f32 0.0, %v467
        %v469 = vpop.f32.mrf.mxu0
        %470 = vmatprep.mubr.f32.mxu0 0.0
        %471 = vmatmul.mubr.f32.gmra.mxu0 %v337
        %v472 = vpop.f32.mrf.mxu0
        %v473 = vadd.f32 0.0, %v472
        %v474 = vpop.f32.mrf.mxu0
        %475 = vmatprep.mubr.f32.mxu0 0.0
        %476 = vmatmul.mubr.f32.gmra.mxu0 %v340
        %v477 = vpop.f32.mrf.mxu0
        %v478 = vadd.f32 0.0, %v477
        %v479 = vpop.f32.mrf.mxu0
        %480 = vmatprep.mubr.f32.mxu0 0.0
        %481 = vmatmul.mubr.f32.gmra.mxu0 %v343
        %v482 = vpop.f32.mrf.mxu0
        %v483 = vadd.f32 0.0, %v482
        %v484 = vpop.f32.mrf.mxu0
        %485 = vmatprep.mubr.f32.mxu0 0.0
        %486 = vmatmul.mubr.f32.gmra.mxu0 %v346
        %v487 = vpop.f32.mrf.mxu0
        %v488 = vadd.f32 0.0, %v487
        %v489 = vpop.f32.mrf.mxu0
        %490 = vmatprep.mubr.f32.mxu0 0.0
        %491 = vmatmul.mubr.f32.gmra.mxu0 %v349
        %v492 = vpop.f32.mrf.mxu0
        %v493 = vadd.f32 0.0, %v492
        %v494 = vpop.f32.mrf.mxu0
        %495 = vmatprep.mubr.f32.mxu0 0.0
        %496 = vmatmul.mubr.f32.gmra.mxu0 %v352
        %v497 = vpop.f32.mrf.mxu0
        %v498 = vadd.f32 0.0, %v497
        %v499 = vpop.f32.mrf.mxu0
        %500 = vmatprep.mubr.f32.mxu0 0.0
        %501 = vmatmul.mubr.f32.gmra.mxu0 %v355
        %v502 = vpop.f32.mrf.mxu0
        %v503 = vadd.f32 0.0, %v502
        %v504 = vpop.f32.mrf.mxu0
        %505 = vmatprep.mubr.f32.mxu0 0.0
        %506 = vmatmul.mubr.f32.gmra.mxu0 %v358
        %v507 = vpop.f32.mrf.mxu0
        %v508 = vadd.f32 0.0, %v507
        %v509 = vpop.f32.mrf.mxu0
        %510 = vmatprep.mubr.f32.mxu0 0.0
        %511 = vmatmul.mubr.f32.gmra.mxu0 %v361
        %v512 = vpop.f32.mrf.mxu0
        %v513 = vadd.f32 0.0, %v512
        %v514 = vpop.f32.mrf.mxu0
        %515 = vmatprep.mubr.f32.mxu0 0.0
        %516 = vmatmul.mubr.f32.gmra.mxu0 %v364
        %v517 = vpop.f32.mrf.mxu0
        %v518 = vadd.f32 0.0, %v517
        %v519 = vpop.f32.mrf.mxu0
        %520 = vmatprep.mubr.f32.mxu0 0.0
        %521 = vmatmul.mubr.f32.gmra.mxu0 %v367
        %v522 = vpop.f32.mrf.mxu0
        %v523 = vadd.f32 0.0, %v522
        %v524 = vpop.f32.mrf.mxu0
        %525 = vmatprep.mubr.f32.mxu0 0.0
        %526 = vmatmul.mubr.f32.gmra.mxu0 %v370
        %v527 = vpop.f32.mrf.mxu0
        %v528 = vadd.f32 0.0, %v527
        %v529 = vpop.f32.mrf.mxu0
        %530 = vdwg.mxu0
        %vm531 = vcmask 261120
        %532 = vst.msk [vmem:[#allocation2] sm:$0xff] %vm531, %v443
        %533 = vst.msk [vmem:[#allocation2 + $0x8] sm:$0xff] %vm531, %v448
        %534 = vst.msk [vmem:[#allocation2 + $0x10] sm:$0xff] %vm531, %v453
        %535 = vst.msk [vmem:[#allocation2 + $0x18] sm:$0xff] %vm531, %v458
        %536 = vst.msk [vmem:[#allocation2 + $0x20] sm:$0xff] %vm531, %v463
        %537 = vst.msk [vmem:[#allocation2 + $0x28] sm:$0xff] %vm531, %v468
        %538 = vst.msk [vmem:[#allocation2 + $0x30] sm:$0xff] %vm531, %v473
        %539 = vst.msk [vmem:[#allocation2 + $0x38] sm:$0xff] %vm531, %v478
        %540 = vst.msk [vmem:[#allocation2 + $0x40] sm:$0xff] %vm531, %v483
        %541 = vst.msk [vmem:[#allocation2 + $0x48] sm:$0xff] %vm531, %v488
        %542 = vst.msk [vmem:[#allocation2 + $0x50] sm:$0xff] %vm531, %v493
        %543 = vst.msk [vmem:[#allocation2 + $0x58] sm:$0xff] %vm531, %v498
        %544 = vst.msk [vmem:[#allocation2 + $0x60] sm:$0xff] %vm531, %v503
        %545 = vst.msk [vmem:[#allocation2 + $0x68] sm:$0xff] %vm531, %v508
        %546 = vst.msk [vmem:[#allocation2 + $0x70] sm:$0xff] %vm531, %v513
        %547 = vst.msk [vmem:[#allocation2 + $0x78] sm:$0xff] %vm531, %v518
        %548 = vst.msk [vmem:[#allocation2 + $0x80] sm:$0xff] %vm531, %v523
        %549 = vst.msk [vmem:[#allocation2 + $0x88] sm:$0xff] %vm531, %v528
        %v550 = vld [vmem:[%s296] sm:$0xff]
        %v551 = vld [vmem:[%s296 + $0x8] sm:$0xf]
        %v552 = vld [vmem:[%s3] sm:$0x1]
        %v553 = vld [vmem:[#allocation2] ss:$12 sm:$0xff]
        %s554 = scalar_lea.vmem [#allocation2], 96
        %v555 = vld [vmem:[%s554] ss:$12 sm:$0xf]
        %s556 = scalar_lea.vmem [#allocation2], 1
        %v557 = vld [vmem:[%s556] ss:$12 sm:$0xff]
        %s558 = scalar_lea.vmem [#allocation2], 97
        %v559 = vld [vmem:[%s558] ss:$12 sm:$0xf]
        %v560 = vmul.f32 %v553, %v557
        %v561 = vmul.f32 %v555, %v559
        %s562 = scalar_lea.vmem [#allocation2], 2
        %v563 = vld [vmem:[%s562] ss:$12 sm:$0xff]
        %s564 = scalar_lea.vmem [#allocation2], 98
        %v565 = vld [vmem:[%s564] ss:$12 sm:$0xf]
        %v566 = vmul.f32 %v560, %v563
        %v567 = vmul.f32 %v561, %v565
        %v568 = vmul.f32 %v566, %v550
        %v569 = vmul.f32 %v567, %v551
        %v571 = vlaneseq
        %v572 = vshrl.u32 %v571, 7
        %v573 = vsub.s32 0, %v572
        %v574 = vrot.slane %v552, %v573
        %v576 = vmul.f32 %v568, %v574
        %v577 = vmul.f32 %v569, %v574
        %v578 = vsel %vm531, %v576, 0.0
        %579 = vadd.xlane.f32.xlu0 %v578
        %v580 = vpop.xlane.xlu0 %579
        %vm581 = vcmask 257024
        %v582 = vsel %vm581, %v577, 0.0
        %583 = vadd.xlane.f32.xlu0 %v582
        %v584 = vpop.xlane.xlu0 %583
        %s585 = scalar_lea.vmem [#allocation2], 3
        %v586 = vld [vmem:[%s585] ss:$12 sm:$0xff]
        %s587 = scalar_lea.vmem [#allocation2], 99
        %v588 = vld [vmem:[%s587] ss:$12 sm:$0xf]
        %s589 = scalar_lea.vmem [#allocation2], 4
        %v590 = vld [vmem:[%s589] ss:$12 sm:$0xff]
        %s591 = scalar_lea.vmem [#allocation2], 100
        %v592 = vld [vmem:[%s591] ss:$12 sm:$0xf]
        %v593 = vmul.f32 %v586, %v590
        %v594 = vmul.f32 %v588, %v592
        %s595 = scalar_lea.vmem [#allocation2], 5
        %v596 = vld [vmem:[%s595] ss:$12 sm:$0xff]
        %s597 = scalar_lea.vmem [#allocation2], 101
        %v598 = vld [vmem:[%s597] ss:$12 sm:$0xf]
        %v599 = vmul.f32 %v593, %v596
        %v600 = vmul.f32 %v594, %v598
        %v601 = vmul.f32 %v599, %v550
        %v602 = vmul.f32 %v600, %v551
        %v603 = vmul.f32 %v601, %v574
        %v604 = vmul.f32 %v602, %v574
        %v605 = vsel %vm531, %v603, 0.0
        %606 = vadd.xlane.f32.xlu0 %v605
        %v607 = vpop.xlane.xlu0 %606
        %v608 = vsel %vm581, %v604, 0.0
        %609 = vadd.xlane.f32.xlu0 %v608
        %v610 = vpop.xlane.xlu0 %609
        %s611 = scalar_lea.vmem [#allocation2], 6
        %v612 = vld [vmem:[%s611] ss:$12 sm:$0xff]
        %s613 = scalar_lea.vmem [#allocation2], 102
        %v614 = vld [vmem:[%s613] ss:$12 sm:$0xf]
        %s615 = scalar_lea.vmem [#allocation2], 7
        %v616 = vld [vmem:[%s615] ss:$12 sm:$0xff]
        %s617 = scalar_lea.vmem [#allocation2], 103
        %v618 = vld [vmem:[%s617] ss:$12 sm:$0xf]
        %v619 = vmul.f32 %v612, %v616
        %v620 = vmul.f32 %v614, %v618
        %s621 = scalar_lea.vmem [#allocation2], 8
        %v622 = vld [vmem:[%s621] ss:$12 sm:$0xff]
        %s623 = scalar_lea.vmem [#allocation2], 104
        %v624 = vld [vmem:[%s623] ss:$12 sm:$0xf]
        %v625 = vmul.f32 %v619, %v622
        %v626 = vmul.f32 %v620, %v624
        %v627 = vmul.f32 %v625, %v550
        %v628 = vmul.f32 %v626, %v551
        %v629 = vmul.f32 %v627, %v574
        %v630 = vmul.f32 %v628, %v574
        %v631 = vsel %vm531, %v629, 0.0
        %632 = vadd.xlane.f32.xlu0 %v631
        %v633 = vpop.xlane.xlu0 %632
        %v634 = vsel %vm581, %v630, 0.0
        %635 = vadd.xlane.f32.xlu0 %v634
        %v636 = vpop.xlane.xlu0 %635
        %s637 = scalar_lea.vmem [#allocation2], 9
        %v638 = vld [vmem:[%s637] ss:$12 sm:$0xff]
        %s639 = scalar_lea.vmem [#allocation2], 105
        %v640 = vld [vmem:[%s639] ss:$12 sm:$0xf]
        %s641 = scalar_lea.vmem [#allocation2], 10
        %v642 = vld [vmem:[%s641] ss:$12 sm:$0xff]
        %s643 = scalar_lea.vmem [#allocation2], 106
        %v644 = vld [vmem:[%s643] ss:$12 sm:$0xf]
        %v645 = vmul.f32 %v638, %v642
        %v646 = vmul.f32 %v640, %v644
        %s647 = scalar_lea.vmem [#allocation2], 11
        %v648 = vld [vmem:[%s647] ss:$12 sm:$0xff]
        %s649 = scalar_lea.vmem [#allocation2], 107
        %v650 = vld [vmem:[%s649] ss:$12 sm:$0xf]
        %v651 = vmul.f32 %v645, %v648
        %v652 = vmul.f32 %v646, %v650
        %v653 = vmul.f32 %v651, %v550
        %v654 = vmul.f32 %v652, %v551
        %v655 = vmul.f32 %v653, %v574
        %v656 = vmul.f32 %v654, %v574
        %v657 = vsel %vm531, %v655, 0.0
        %658 = vadd.xlane.f32.xlu0 %v657
        %v659 = vpop.xlane.xlu0 %658
        %v660 = vsel %vm581, %v656, 0.0
        %661 = vadd.xlane.f32.xlu0 %v660
        %v662 = vpop.xlane.xlu0 %661
        %v663 = vmax.f32 %v580, %v607
        %v664 = vmax.f32 %v584, %v610
        %v665 = vmax.f32 %v663, %v633
        %v666 = vmax.f32 %v664, %v636
        %v667 = vmax.f32 %v665, %v659
        %v668 = vmax.f32 %v666, %v662
        %v669 = vsub.f32 %v580, %v667
        %v670 = vsub.f32 %v584, %v668
        %v671 = vmul.f32 %v669, 1.442695
        %v672 = vpow.pop %v671
        %v673 = vmul.f32 %v670, 1.442695
        %v674 = vpow.pop %v673
        %v675 = vsub.f32 %v607, %v667
        %v676 = vsub.f32 %v610, %v668
        %v677 = vmul.f32 %v675, 1.442695
        %v678 = vpow.pop %v677
        %v679 = vmul.f32 %v676, 1.442695
        %v680 = vpow.pop %v679
        %v681 = vsub.f32 %v633, %v667
        %v682 = vsub.f32 %v636, %v668
        %v683 = vmul.f32 %v681, 1.442695
        %v684 = vpow.pop %v683
        %v685 = vmul.f32 %v682, 1.442695
        %v686 = vpow.pop %v685
        %v687 = vsub.f32 %v659, %v667
        %v688 = vsub.f32 %v662, %v668
        %v689 = vmul.f32 %v687, 1.442695
        %v690 = vpow.pop %v689
        %v691 = vmul.f32 %v688, 1.442695
        %v692 = vpow.pop %v691
        %v693 = vadd.f32 %v672, %v678
        %v694 = vadd.f32 %v674, %v680
        %v695 = vadd.f32 %v693, %v684
        %v696 = vadd.f32 %v694, %v686
        %v697 = vadd.f32 %v695, %v690
        %v698 = vadd.f32 %v696, %v692
        %v699 = vmul.f32 %v672, %v568
        %v700 = vmul.f32 %v674, %v569
        %v701 = vmul.f32 %v678, %v601
        %v702 = vmul.f32 %v680, %v602
        %v703 = vadd.f32 %v699, %v701
        %v704 = vadd.f32 %v700, %v702
        %v705 = vmul.f32 %v684, %v627
        %v706 = vmul.f32 %v686, %v628
        %v707 = vadd.f32 %v703, %v705
        %v708 = vadd.f32 %v704, %v706
        %v709 = vmul.f32 %v690, %v653
        %v710 = vmul.f32 %v692, %v654
        %v711 = vadd.f32 %v707, %v709
        %v712 = vadd.f32 %v708, %v710
        %v713 = vrcp.pop %v697
        %v714 = vmul.f32 %v711, %v713
        %v715 = vrcp.pop %v698
        %v716 = vmul.f32 %v712, %v715
        %v717 = vld [vmem:[%s4] sm:$0xff]
        %v718 = vld [vmem:[%s4 + $0x8] sm:$0xff]
        %v719 = vld [vmem:[%s4 + $0x10] sm:$0xff]
        %v720 = vld [vmem:[%s4 + $0x18] sm:$0xff]
        %v721 = vld [vmem:[%s5] sm:$0x1]
        %v723 = vlaneseq
        %v724 = vshrl.u32 %v723, 7
        %v725 = vsub.s32 0, %v724
        %v726 = vrot.slane %v721, %v725
        %v729 = vsel %vm531, %v714, 0
        %v732 = vsel %vm531, %v716, 0
        %734 = vmatprep.subr.mxu0 0.0
        %735 = vmatpush1.msra.mxu0 0.0
        %736 = vmatprep.subr.mxu0 0.0
        %737 = vmatpush1.msra.mxu0 0.0
        %738 = vmatprep.subr.mxu0 0.0
        %739 = vmatpush1.msra.mxu0 0.0
        %740 = vmatprep.subr.mxu0 0.0
        %741 = vmatpush1.msra.mxu0 0.0
        %742 = vmatprep.subr.mxu0 0.0
        %743 = vmatpush1.msra.mxu0 0.0
        %744 = vmatprep.subr.mxu0 0.0
        %745 = vmatpush1.msra.mxu0 0.0
        %746 = vmatprep.subr.mxu0 0.0
        %747 = vmatpush1.msra.mxu0 0.0
        %748 = vmatprep.subr.mxu0 0.0
        %749 = vmatpush1.msra.mxu0 0.0
        %750 = vmatprep.subr.mxu0 0.0
        %751 = vmatpush1.msra.mxu0 0.0
        %752 = vmatprep.subr.mxu0 0.0
        %753 = vmatpush1.msra.mxu0 0.0
        %754 = vmatprep.subr.mxu0 0.0
        %755 = vmatpush1.msra.mxu0 0.0
        %756 = vmatprep.subr.mxu0 0.0
        %757 = vmatpush1.msra.mxu0 0.0
        %758 = vmatprep.subr.mxu0 0.0
        %759 = vmatpush1.msra.mxu0 %v720
        %760 = vmatprep.subr.mxu0 0.0
        %761 = vmatpush1.msra.mxu0 %v719
        %762 = vmatprep.subr.mxu0 0.0
        %763 = vmatpush1.msra.mxu0 %v718
        %764 = vmatprep.subr.mxu0 0.0
        %765 = vmatpush1.msra.mxu0 %v717
        %766 = vmatprep.subr.mxu0 0.0
        %767 = vmatpush2.msra.mxu0 0.0
        %768 = vmatprep.subr.mxu0 0.0
        %769 = vmatpush2.msra.mxu0 0.0
        %770 = vmatprep.subr.mxu0 0.0
        %771 = vmatpush2.msra.mxu0 0.0
        %772 = vmatprep.subr.mxu0 0.0
        %773 = vmatpush2.msra.mxu0 0.0
        %774 = vmatprep.subr.mxu0 0.0
        %775 = vmatpush2.msra.mxu0 0.0
        %776 = vmatprep.subr.mxu0 0.0
        %777 = vmatpush2.msra.mxu0 0.0
        %778 = vmatprep.subr.mxu0 0.0
        %779 = vmatpush2.msra.mxu0 0.0
        %780 = vmatprep.subr.mxu0 0.0
        %781 = vmatpush2.msra.mxu0 0.0
        %782 = vmatprep.subr.mxu0 0.0
        %783 = vmatpush2.msra.mxu0 0.0
        %784 = vmatprep.subr.mxu0 0.0
        %785 = vmatpush2.msra.mxu0 0.0
        %786 = vmatprep.subr.mxu0 0.0
        %787 = vmatpush2.msra.mxu0 0.0
        %788 = vmatprep.subr.mxu0 0.0
        %789 = vmatpush2.msra.mxu0 0.0
        %790 = vmatprep.subr.mxu0 0.0
        %791 = vmatpush2.msra.mxu0 0.0
        %792 = vmatprep.subr.mxu0 0.0
        %793 = vmatpush2.msra.mxu0 0.0
        %794 = vmatprep.subr.mxu0 0.0
        %795 = vmatpush2.msra.mxu0 0.0
        %796 = vmatprep.subr.mxu0 0.0
        %797 = vmatpush2.msra.mxu0 0.0
        %798 = vmatprep.mubr.f32.mxu0 0.0
        %799 = vmatmul.mubr.f32.gmra.mxu0 %v729
        %v800 = vpop.f32.mrf.mxu0
        %v801 = vadd.f32 %v726, %v800
        %v802 = vpop.f32.mrf.mxu0
        %803 = vmatprep.mubr.f32.mxu0 0.0
        %804 = vmatmul.mubr.f32.gmra.mxu0 %v732
        %v805 = vpop.f32.mrf.mxu0
        %v806 = vadd.f32 %v726, %v805
        %v807 = vpop.f32.mrf.mxu0
        %808 = vdwg.mxu0
        %v809 = vmax.f32 %v801, 0.0
        %v810 = vmax.f32 %v806, 0.0
        %v811 = vld [vmem:[%s6] sm:$0x3]
        %v813 = vsel %vm317, %v811, 0
        %v816 = vsel %vm372, %v810, 0
        %818 = vmatprep.subr.mxu0 0.0
        %819 = vmatpush1.msra.mxu0 0.0
        %820 = vmatprep.subr.mxu0 0.0
        %821 = vmatpush1.msra.mxu0 0.0
        %822 = vmatprep.subr.mxu0 0.0
        %823 = vmatpush1.msra.mxu0 0.0
        %824 = vmatprep.subr.mxu0 0.0
        %825 = vmatpush1.msra.mxu0 0.0
        %826 = vmatprep.subr.mxu0 0.0
        %827 = vmatpush1.msra.mxu0 0.0
        %828 = vmatprep.subr.mxu0 0.0
        %829 = vmatpush1.msra.mxu0 0.0
        %830 = vmatprep.subr.mxu0 0.0
        %831 = vmatpush1.msra.mxu0 0.0
        %832 = vmatprep.subr.mxu0 0.0
        %833 = vmatpush1.msra.mxu0 0.0
        %834 = vmatprep.subr.mxu0 0.0
        %835 = vmatpush1.msra.mxu0 0.0
        %836 = vmatprep.subr.mxu0 0.0
        %837 = vmatpush1.msra.mxu0 0.0
        %838 = vmatprep.subr.mxu0 0.0
        %839 = vmatpush1.msra.mxu0 0.0
        %840 = vmatprep.subr.mxu0 0.0
        %841 = vmatpush1.msra.mxu0 0.0
        %842 = vmatprep.subr.mxu0 0.0
        %843 = vmatpush1.msra.mxu0 0.0
        %844 = vmatprep.subr.mxu0 0.0
        %845 = vmatpush1.msra.mxu0 0.0
        %846 = vmatprep.subr.mxu0 0.0
        %847 = vmatpush1.msra.mxu0 %v816
        %848 = vmatprep.subr.mxu0 0.0
        %849 = vmatpush1.msra.mxu0 %v809
        %850 = vmatprep.subr.mxu0 0.0
        %851 = vmatpush2.msra.mxu0 0.0
        %852 = vmatprep.subr.mxu0 0.0
        %853 = vmatpush2.msra.mxu0 0.0
        %854 = vmatprep.subr.mxu0 0.0
        %855 = vmatpush2.msra.mxu0 0.0
        %856 = vmatprep.subr.mxu0 0.0
        %857 = vmatpush2.msra.mxu0 0.0
        %858 = vmatprep.subr.mxu0 0.0
        %859 = vmatpush2.msra.mxu0 0.0
        %860 = vmatprep.subr.mxu0 0.0
        %861 = vmatpush2.msra.mxu0 0.0
        %862 = vmatprep.subr.mxu0 0.0
        %863 = vmatpush2.msra.mxu0 0.0
        %864 = vmatprep.subr.mxu0 0.0
        %865 = vmatpush2.msra.mxu0 0.0
        %866 = vmatprep.subr.mxu0 0.0
        %867 = vmatpush2.msra.mxu0 0.0
        %868 = vmatprep.subr.mxu0 0.0
        %869 = vmatpush2.msra.mxu0 0.0
        %870 = vmatprep.subr.mxu0 0.0
        %871 = vmatpush2.msra.mxu0 0.0
        %872 = vmatprep.subr.mxu0 0.0
        %873 = vmatpush2.msra.mxu0 0.0
        %874 = vmatprep.subr.mxu0 0.0
        %875 = vmatpush2.msra.mxu0 0.0
        %876 = vmatprep.subr.mxu0 0.0
        %877 = vmatpush2.msra.mxu0 0.0
        %878 = vmatprep.subr.mxu0 0.0
        %879 = vmatpush2.msra.mxu0 0.0
        %880 = vmatprep.subr.mxu0 0.0
        %881 = vmatpush2.msra.mxu0 0.0
        %882 = vmatprep.mubr.f32.mxu0 0.0
        %883 = vmatmul.mubr.f32.gmra.mxu0 %v813
        %v884 = vpop.f32.mrf.mxu0
        %v885 = vadd.f32 0.0, %v884
        %v886 = vpop.f32.mrf.mxu0
        %887 = vdwg.mxu0
        %vm888 = vcmask 123904
        %889 = vst.msk [vmem:[%s286] sm:$0x3] %vm888, %v885
        %s890 = sand.u32 %s186, 1
        %s891 = scalar_lea.sflag [#allocation4], %s890
        %s892 = sand.u32 %s186, 1
        %s893 = smul.addr %s892, 2
        %s894 = scalar_lea.vmem [#allocation3], %s893
        // Predicated region
        $region49: #{graph_attention_forward.1} parent=47 // pred_check
          %p895 = pneg %p196
        $region50: #{graph_attention_forward.1} parent=47 // pred_check_branch
          %897 = sbr.rel (%p895) target = $region52
        $region51: #{graph_attention_forward.1} parent=47 // pred_region
          %s899 = ssub.s32 32, 32
          %900 = vsyncadd %s891, %s899
          %s901 = smul.addr %s21, 32
          %s902 = scalar_lea.hbm %s7, %s901
          %s904 = sshll.u32 %s894, 4
          %s905 = int_to_ptr.vmem [resolvable:$true] %s904
          %907 = dma.vmem_to_hbm [thread:$0]  %s905, 32, %s902, %s891
        $region52: #{graph_attention_forward.1} parent=47 // pred_fallthru
          _
      $region48: #{graph_attention_forward.1} parent=5 // pred_fallthru
        _
      %p908 = scmp.le.s32.totalorder 2, %s16
      // Predicated region
      $region53: #{graph_attention_forward.1} parent=5 // pred_check
        %p909 = pneg %p908
      $region54: #{graph_attention_forward.1} parent=5 // pred_check_branch
        %911 = sbr.rel (%p909) target = $region56
      $region55: #{graph_attention_forward.1} parent=5 // pred_region
        %s912 = ssub.s32 %s16, 2
        // Predicated region
        $region57: #{graph_attention_forward.1} parent=55 // pred_check
          %p913 = pneg %p202
        $region58: #{graph_attention_forward.1} parent=55 // pred_check_branch
          %915 = sbr.rel (%p913) target = $region60
        $region59: #{graph_attention_forward.1} parent=55 // pred_region
          %s916 = sand.u32 %s187, 1
          %s917 = scalar_lea.sflag [#allocation4], %s916
          %s918 = sand.u32 %s187, 1
          %s919 = smul.addr %s918, 2
          %s920 = scalar_lea.vmem [#allocation3], %s919
          %921 = dma.done %s917, 32
        $region60: #{graph_attention_forward.1} parent=55 // pred_fallthru
          _
      $region56: #{graph_attention_forward.1} parent=5 // pred_fallthru
        _
    $region6: #{graph_attention_forward.1} parent=1 // loop_footer
      %s20 = sadd.s32 1, %s16
    $region7: #{graph_attention_forward.1} parent=1 // loop_footer_branch
      %15 = sbr.rel target = $region3
    $region8: #{graph_attention_forward.1} parent=1 // loop_exit
      _
    %922 = vsyncpa [#allocation4], 1
    %s923 = scalar_lea.sflag [#allocation4], 1
    %924 = vsyncpa %s923, 1

</llo_original>
